<compile_context>
chip_gen: v5e
topology: v5e:2x2
jax: 0.10.0
libtpu: 0.0.40
codegen_flags: <defaults>
</compile_context>

<pallas_src>
import functools

import jax
import jax.numpy as jnp
from jax.experimental import pallas as pl
from jax.experimental.pallas import tpu as pltpu


# ----------------------------------------------------------------------------
# Fused GQA attention kernel: one grid step handles `bb` batch elements.
# ----------------------------------------------------------------------------
def _gqa_attention_kernel(x_ref, wq_ref, bq_ref, wk_ref, bk_ref, wv_ref,
                          bv_ref, wo_ref, bo_ref, o_ref, *, heads, kv_heads):
    bb, S, D = x_ref.shape
    head_dim = wq_ref.shape[1] // heads
    groups = heads // kv_heads
    scale = head_dim ** (-0.5)

    # Merge the batch-block rows so every projection is ONE full-width matmul.
    # (Collapsing leading dims is layout-free since S is a multiple of 8.)
    x = x_ref[...].reshape(bb * S, D)
    xb = x.astype(jnp.bfloat16)

    # Full-width Q/K/V projections: bf16 operands, f32 accumulation + f32 bias.
    q = jnp.dot(xb, wq_ref[...], preferred_element_type=jnp.float32) + bq_ref[...]
    k = jnp.dot(xb, wk_ref[...], preferred_element_type=jnp.float32) + bk_ref[...]
    v = jnp.dot(xb, wv_ref[...], preferred_element_type=jnp.float32) + bv_ref[...]
    q = q * scale                                   # fold the 1/sqrt(hd) into q

    # Scores for every (batch, head) pair, stacked along sublanes so the
    # softmax (max / exp / sum / reciprocal) is amortized over one large tile.
    logits_parts = []
    for b in range(bb):
        r0 = b * S
        for h in range(heads):
            kvh = h // groups                        # GQA: kv head for q head h
            qh = q[r0:r0 + S, h * head_dim:(h + 1) * head_dim].astype(jnp.bfloat16)
            kh = k[r0:r0 + S, kvh * head_dim:(kvh + 1) * head_dim].astype(jnp.bfloat16)
            # q @ k^T, contracting the head_dim axis -> (S, S)
            logits_parts.append(
                jax.lax.dot_general(qh, kh, (((1,), (1,)), ((), ())),
                                    preferred_element_type=jnp.float32))
    logits = jnp.concatenate(logits_parts, axis=0)   # (bb*heads*S, S) f32

    # One softmax over all (batch, head) rows; divide goes to the EUP.
    m = jnp.max(logits, axis=-1, keepdims=True)
    e = jnp.exp(logits - m)
    denom = jnp.sum(e, axis=-1, keepdims=True)
    probs = e * pl.reciprocal(denom, approx=True)

    # Per-(batch, head) context, reassembled to (bb*S, heads*head_dim) so the
    # output projection is a single concat-then-project matmul.
    ctx_rows = []
    for b in range(bb):
        r0 = b * S
        per_head = []
        for h in range(heads):
            kvh = h // groups
            idx = b * heads + h
            p_h = probs[idx * S:(idx + 1) * S, :].astype(jnp.bfloat16)
            v_h = v[r0:r0 + S, kvh * head_dim:(kvh + 1) * head_dim].astype(jnp.bfloat16)
            per_head.append(jnp.dot(p_h, v_h, preferred_element_type=jnp.float32))
        ctx_rows.append(jnp.concatenate(per_head, axis=-1))   # (S, heads*head_dim)
    ctx = jnp.concatenate(ctx_rows, axis=0)                   # (bb*S, heads*head_dim)

    out = (jnp.dot(ctx.astype(jnp.bfloat16), wo_ref[...],
                   preferred_element_type=jnp.float32) + bo_ref[...])

    # NOTE: D=32 < 128 lanes, so stores are inherently masked at this size;
    # at real sizes present a lane-dense (multiple-of-128) output slab.
    for b in range(bb):
        o_ref[b] = out[b * S:(b + 1) * S, :]


def gqa_attention(x, params, *, heads, kv_heads, batch_block=None):
    B, S, D = x.shape
    h_out = params["wq"].shape[1]     # heads * head_dim
    kv_out = params["wk"].shape[1]    # kv_heads * head_dim

    if batch_block is None:
        # Keep >= 2 grid steps when B > 1 so v7x's two TensorCores both get
        # work; larger B automatically merges batches per step.
        batch_block = max(1, B // 2)
    assert B % batch_block == 0
    grid = (B // batch_block,)

    kernel = functools.partial(_gqa_attention_kernel,
                               heads=heads, kv_heads=kv_heads)

    def rep2d(shape):   # weight / bias block resident for every grid step
        return pl.BlockSpec(shape, lambda i: (0, 0))

    # bf16 weights for MXU throughput; biases stay f32.
    wq = params["wq"].astype(jnp.bfloat16)
    wk = params["wk"].astype(jnp.bfloat16)
    wv = params["wv"].astype(jnp.bfloat16)
    wo = params["wo"].astype(jnp.bfloat16)

    return pl.pallas_call(
        kernel,
        out_shape=jax.ShapeDtypeStruct((B, S, D), jnp.float32),
        grid=grid,
        in_specs=[
            pl.BlockSpec((batch_block, S, D), lambda i: (i, 0, 0)),
            rep2d((D, h_out)), rep2d((1, h_out)),      # wq, bq
            rep2d((D, kv_out)), rep2d((1, kv_out)),    # wk, bk
            rep2d((D, kv_out)), rep2d((1, kv_out)),    # wv, bv
            rep2d((h_out, D)), rep2d((1, D)),          # wo, bo
        ],
        out_specs=pl.BlockSpec((batch_block, S, D), lambda i: (i, 0, 0)),
        compiler_params=pltpu.CompilerParams(
            dimension_semantics=("parallel",)),
    )(x, wq, params["bq"], wk, params["bk"], wv, params["bv"], wo, params["bo"])


# ----------------------------------------------------------------------------
# Deterministic params (nn.Linear weights stored pre-transposed as (in, out))
# ----------------------------------------------------------------------------
def init_params(key, *, dim, heads, kv_heads):
    head_dim = dim // heads
    ks = jax.random.split(key, 8)

    def nrm(k, shape, scale=0.02):
        return (scale * jax.random.normal(k, shape)).astype(jnp.float32)

    return {
        "wq": nrm(ks[0], (dim, heads * head_dim)),
        "bq": nrm(ks[1], (1, heads * head_dim)),
        "wk": nrm(ks[2], (dim, kv_heads * head_dim)),
        "bk": nrm(ks[3], (1, kv_heads * head_dim)),
        "wv": nrm(ks[4], (dim, kv_heads * head_dim)),
        "bv": nrm(ks[5], (1, kv_heads * head_dim)),
        "wo": nrm(ks[6], (heads * head_dim, dim)),
        "bo": nrm(ks[7], (1, dim)),
    }


# ----------------------------------------------------------------------------
# Pure-JAX f32 reference (mirrors the PyTorch Attention.forward)
# ----------------------------------------------------------------------------
def gqa_attention_ref(x, p, *, heads, kv_heads):
    B, S, D = x.shape
    hd = D // heads
    groups = heads // kv_heads
    q = jnp.einsum("bsd,de->bse", x, p["wq"]) + p["bq"][0]
    k = jnp.einsum("bsd,de->bse", x, p["wk"]) + p["bk"][0]
    v = jnp.einsum("bsd,de->bse", x, p["wv"]) + p["bv"][0]
    q = q.reshape(B, S, heads, hd).transpose(0, 2, 1, 3)
    k = k.reshape(B, S, kv_heads, hd).transpose(0, 2, 1, 3)
    v = v.reshape(B, S, kv_heads, hd).transpose(0, 2, 1, 3)
    k = jnp.repeat(k, groups, axis=1)
    v = jnp.repeat(v, groups, axis=1)
    logits = jnp.einsum("bhqd,bhkd->bhqk", q, k) * (hd ** (-0.5))
    probs = jax.nn.softmax(logits, axis=-1)
    ctx = jnp.einsum("bhqk,bhkd->bhqd", probs, v)
    ctx = ctx.transpose(0, 2, 1, 3).reshape(B, S, heads * hd)
    return jnp.einsum("bsd,de->bse", ctx, p["wo"]) + p["bo"][0]


if __name__ == "__main__":
    dim, heads, kv_heads = 32, 4, 2
    B, S = 2, 8

    key = jax.random.PRNGKey(0)
    pkey, xkey, x2key = jax.random.split(key, 3)
    params = init_params(pkey, dim=dim, heads=heads, kv_heads=kv_heads)

    # Primary case: B=2 -> batch_block=1, grid=(2,) parallel.
    x = jax.random.normal(xkey, (B, S, dim), dtype=jnp.float32)
    out = gqa_attention(x, params, heads=heads, kv_heads=kv_heads)
    jax.block_until_ready(out)
    ref = gqa_attention_ref(x, params, heads=heads, kv_heads=kv_heads)
    assert out.shape == (B, S, dim)
    assert bool(jnp.all(jnp.isfinite(out)))
    assert bool(jnp.allclose(out, ref, atol=2e-2, rtol=2e-2))

    # Merged-batch path: B=4, batch_block=2 -> (bb*S, D) projections, grid=(2,).
    x2 = jax.random.normal(x2key, (4, S, dim), dtype=jnp.float32)
    out2 = gqa_attention(x2, params, heads=heads, kv_heads=kv_heads, batch_block=2)
    jax.block_until_ready(out2)
    ref2 = gqa_attention_ref(x2, params, heads=heads, kv_heads=kv_heads)
    assert bool(jnp.all(jnp.isfinite(out2)))
    assert bool(jnp.allclose(out2, ref2, atol=2e-2, rtol=2e-2))

    print("KERNEL_OK")
</pallas_src>

<mosaic_0001>
module attributes {stable_mosaic.version = 11 : i64} {
  func.func @_gqa_attention_kernel(%arg0: i32, %arg1: memref<1x8x32xf32, #tpu.memory_space<vmem>>, %arg2: memref<32x32xbf16, #tpu.memory_space<vmem>>, %arg3: memref<1x32xf32, #tpu.memory_space<vmem>>, %arg4: memref<32x16xbf16, #tpu.memory_space<vmem>>, %arg5: memref<1x16xf32, #tpu.memory_space<vmem>>, %arg6: memref<32x16xbf16, #tpu.memory_space<vmem>>, %arg7: memref<1x16xf32, #tpu.memory_space<vmem>>, %arg8: memref<32x32xbf16, #tpu.memory_space<vmem>>, %arg9: memref<1x32xf32, #tpu.memory_space<vmem>>, %arg10: memref<1x8x32xf32, #tpu.memory_space<vmem>>) attributes {dimension_semantics = [#tpu.dimension_semantics<parallel>], iteration_bounds = array<i64: 2>, scalar_prefetch = 0 : i64, scratch_operands = 0 : i64, tpu.core_type = #tpu.core_type<tc>, window_params = [{transform_indices = @transform_0, window_bounds = array<i64: 1, 8, 32>}, {pipeline_mode = #tpu.pipeline_mode<synchronous>, transform_indices = @transform_1, window_bounds = array<i64: 32, 32>}, {pipeline_mode = #tpu.pipeline_mode<synchronous>, transform_indices = @transform_2, window_bounds = array<i64: 1, 32>}, {pipeline_mode = #tpu.pipeline_mode<synchronous>, transform_indices = @transform_3, window_bounds = array<i64: 32, 16>}, {pipeline_mode = #tpu.pipeline_mode<synchronous>, transform_indices = @transform_4, window_bounds = array<i64: 1, 16>}, {pipeline_mode = #tpu.pipeline_mode<synchronous>, transform_indices = @transform_5, window_bounds = array<i64: 32, 16>}, {pipeline_mode = #tpu.pipeline_mode<synchronous>, transform_indices = @transform_6, window_bounds = array<i64: 1, 16>}, {pipeline_mode = #tpu.pipeline_mode<synchronous>, transform_indices = @transform_7, window_bounds = array<i64: 32, 32>}, {pipeline_mode = #tpu.pipeline_mode<synchronous>, transform_indices = @transform_8, window_bounds = array<i64: 1, 32>}, {transform_indices = @transform_9, window_bounds = array<i64: 1, 8, 32>}]} {
    %c0 = arith.constant 0 : index
    %c0_0 = arith.constant 0 : index
    %c0_1 = arith.constant 0 : index
    %0 = vector.load %arg1[%c0, %c0_0, %c0_1] : memref<1x8x32xf32, #tpu.memory_space<vmem>>, vector<1x8x32xf32>
    %1 = vector.shape_cast %0 : vector<1x8x32xf32> to vector<8x32xf32>
    %2 = arith.truncf %1 : vector<8x32xf32> to vector<8x32xbf16>
    %c0_2 = arith.constant 0 : index
    %c0_3 = arith.constant 0 : index
    %3 = vector.load %arg2[%c0_2, %c0_3] : memref<32x32xbf16, #tpu.memory_space<vmem>>, vector<32x32xbf16>
    %cst = arith.constant dense<0.000000e+00> : vector<8x32xf32>
    %4 = tpu.matmul %2, %3, %cst {dimension_numbers = #tpu.dot_dimension_numbers<[1], [0], [0], [1], [0, 0, 1, 1], [], []>} : vector<8x32xbf16>, vector<32x32xbf16>, vector<8x32xf32> -> vector<8x32xf32>
    %c0_4 = arith.constant 0 : index
    %c0_5 = arith.constant 0 : index
    %5 = vector.load %arg3[%c0_4, %c0_5] : memref<1x32xf32, #tpu.memory_space<vmem>>, vector<1x32xf32>
    %6 = vector.broadcast %5 : vector<1x32xf32> to vector<8x32xf32>
    %7 = arith.addf %4, %6 : vector<8x32xf32>
    %c0_6 = arith.constant 0 : index
    %c0_7 = arith.constant 0 : index
    %8 = vector.load %arg4[%c0_6, %c0_7] : memref<32x16xbf16, #tpu.memory_space<vmem>>, vector<32x16xbf16>
    %cst_8 = arith.constant dense<0.000000e+00> : vector<8x16xf32>
    %9 = tpu.matmul %2, %8, %cst_8 {dimension_numbers = #tpu.dot_dimension_numbers<[1], [0], [0], [1], [0, 0, 1, 1], [], []>} : vector<8x32xbf16>, vector<32x16xbf16>, vector<8x16xf32> -> vector<8x16xf32>
    %c0_9 = arith.constant 0 : index
    %c0_10 = arith.constant 0 : index
    %10 = vector.load %arg5[%c0_9, %c0_10] : memref<1x16xf32, #tpu.memory_space<vmem>>, vector<1x16xf32>
    %11 = vector.broadcast %10 : vector<1x16xf32> to vector<8x16xf32>
    %12 = arith.addf %9, %11 : vector<8x16xf32>
    %c0_11 = arith.constant 0 : index
    %c0_12 = arith.constant 0 : index
    %13 = vector.load %arg6[%c0_11, %c0_12] : memref<32x16xbf16, #tpu.memory_space<vmem>>, vector<32x16xbf16>
    %cst_13 = arith.constant dense<0.000000e+00> : vector<8x16xf32>
    %14 = tpu.matmul %2, %13, %cst_13 {dimension_numbers = #tpu.dot_dimension_numbers<[1], [0], [0], [1], [0, 0, 1, 1], [], []>} : vector<8x32xbf16>, vector<32x16xbf16>, vector<8x16xf32> -> vector<8x16xf32>
    %c0_14 = arith.constant 0 : index
    %c0_15 = arith.constant 0 : index
    %15 = vector.load %arg7[%c0_14, %c0_15] : memref<1x16xf32, #tpu.memory_space<vmem>>, vector<1x16xf32>
    %16 = vector.broadcast %15 : vector<1x16xf32> to vector<8x16xf32>
    %17 = arith.addf %14, %16 : vector<8x16xf32>
    %cst_16 = arith.constant 0.353553385 : f32
    %18 = vector.broadcast %cst_16 : f32 to vector<8x32xf32>
    %19 = arith.mulf %7, %18 : vector<8x32xf32>
    %20 = vector.extract_strided_slice %19 {offsets = [0, 0], sizes = [8, 8], strides = [1, 1]} : vector<8x32xf32> to vector<8x8xf32>
    %21 = arith.truncf %20 : vector<8x8xf32> to vector<8x8xbf16>
    %22 = vector.extract_strided_slice %12 {offsets = [0, 0], sizes = [8, 8], strides = [1, 1]} : vector<8x16xf32> to vector<8x8xf32>
    %23 = arith.truncf %22 : vector<8x8xf32> to vector<8x8xbf16>
    %cst_17 = arith.constant dense<0.000000e+00> : vector<8x8xf32>
    %24 = tpu.matmul %21, %23, %cst_17 {dimension_numbers = #tpu.dot_dimension_numbers<[1], [1], [0], [0], [0, 0, 1, 0], [], []>} : vector<8x8xbf16>, vector<8x8xbf16>, vector<8x8xf32> -> vector<8x8xf32>
    %25 = vector.extract_strided_slice %19 {offsets = [0, 8], sizes = [8, 8], strides = [1, 1]} : vector<8x32xf32> to vector<8x8xf32>
    %26 = arith.truncf %25 : vector<8x8xf32> to vector<8x8xbf16>
    %27 = vector.extract_strided_slice %12 {offsets = [0, 0], sizes = [8, 8], strides = [1, 1]} : vector<8x16xf32> to vector<8x8xf32>
    %28 = arith.truncf %27 : vector<8x8xf32> to vector<8x8xbf16>
    %cst_18 = arith.constant dense<0.000000e+00> : vector<8x8xf32>
    %29 = tpu.matmul %26, %28, %cst_18 {dimension_numbers = #tpu.dot_dimension_numbers<[1], [1], [0], [0], [0, 0, 1, 0], [], []>} : vector<8x8xbf16>, vector<8x8xbf16>, vector<8x8xf32> -> vector<8x8xf32>
    %30 = vector.extract_strided_slice %19 {offsets = [0, 16], sizes = [8, 8], strides = [1, 1]} : vector<8x32xf32> to vector<8x8xf32>
    %31 = arith.truncf %30 : vector<8x8xf32> to vector<8x8xbf16>
    %32 = vector.extract_strided_slice %12 {offsets = [0, 8], sizes = [8, 8], strides = [1, 1]} : vector<8x16xf32> to vector<8x8xf32>
    %33 = arith.truncf %32 : vector<8x8xf32> to vector<8x8xbf16>
    %cst_19 = arith.constant dense<0.000000e+00> : vector<8x8xf32>
    %34 = tpu.matmul %31, %33, %cst_19 {dimension_numbers = #tpu.dot_dimension_numbers<[1], [1], [0], [0], [0, 0, 1, 0], [], []>} : vector<8x8xbf16>, vector<8x8xbf16>, vector<8x8xf32> -> vector<8x8xf32>
    %35 = vector.extract_strided_slice %19 {offsets = [0, 24], sizes = [8, 8], strides = [1, 1]} : vector<8x32xf32> to vector<8x8xf32>
    %36 = arith.truncf %35 : vector<8x8xf32> to vector<8x8xbf16>
    %37 = vector.extract_strided_slice %12 {offsets = [0, 8], sizes = [8, 8], strides = [1, 1]} : vector<8x16xf32> to vector<8x8xf32>
    %38 = arith.truncf %37 : vector<8x8xf32> to vector<8x8xbf16>
    %cst_20 = arith.constant dense<0.000000e+00> : vector<8x8xf32>
    %39 = tpu.matmul %36, %38, %cst_20 {dimension_numbers = #tpu.dot_dimension_numbers<[1], [1], [0], [0], [0, 0, 1, 0], [], []>} : vector<8x8xbf16>, vector<8x8xbf16>, vector<8x8xf32> -> vector<8x8xf32>
    %40 = tpu.concatenate %24, %29, %34, %39 in 0 : vector<8x8xf32>, vector<8x8xf32>, vector<8x8xf32>, vector<8x8xf32> -> vector<32x8xf32>
    %cst_21 = arith.constant dense<0xFF800000> : vector<32xf32>
    %41 = vector.multi_reduction <maximumf>, %40, %cst_21 [1] : vector<32x8xf32> to vector<32xf32>
    %42 = vector.shape_cast %41 : vector<32xf32> to vector<32x1xf32>
    %43 = vector.broadcast %42 : vector<32x1xf32> to vector<32x8xf32>
    %44 = arith.subf %40, %43 : vector<32x8xf32>
    %45 = math.exp %44 : vector<32x8xf32>
    %cst_22 = arith.constant dense<0.000000e+00> : vector<32xf32>
    %46 = vector.multi_reduction <add>, %45, %cst_22 [1] : vector<32x8xf32> to vector<32xf32>
    %47 = vector.shape_cast %46 : vector<32xf32> to vector<32x1xf32>
    %48 = tpu.reciprocal %47 {approx = true} : vector<32x1xf32> -> vector<32x1xf32>
    %49 = vector.broadcast %48 : vector<32x1xf32> to vector<32x8xf32>
    %50 = arith.mulf %45, %49 : vector<32x8xf32>
    %51 = vector.extract_strided_slice %50 {offsets = [0, 0], sizes = [8, 8], strides = [1, 1]} : vector<32x8xf32> to vector<8x8xf32>
    %52 = arith.truncf %51 : vector<8x8xf32> to vector<8x8xbf16>
    %53 = vector.extract_strided_slice %17 {offsets = [0, 0], sizes = [8, 8], strides = [1, 1]} : vector<8x16xf32> to vector<8x8xf32>
    %54 = arith.truncf %53 : vector<8x8xf32> to vector<8x8xbf16>
    %cst_23 = arith.constant dense<0.000000e+00> : vector<8x8xf32>
    %55 = tpu.matmul %52, %54, %cst_23 {dimension_numbers = #tpu.dot_dimension_numbers<[1], [0], [0], [1], [0, 0, 1, 1], [], []>} : vector<8x8xbf16>, vector<8x8xbf16>, vector<8x8xf32> -> vector<8x8xf32>
    %56 = vector.extract_strided_slice %50 {offsets = [8, 0], sizes = [8, 8], strides = [1, 1]} : vector<32x8xf32> to vector<8x8xf32>
    %57 = arith.truncf %56 : vector<8x8xf32> to vector<8x8xbf16>
    %58 = vector.extract_strided_slice %17 {offsets = [0, 0], sizes = [8, 8], strides = [1, 1]} : vector<8x16xf32> to vector<8x8xf32>
    %59 = arith.truncf %58 : vector<8x8xf32> to vector<8x8xbf16>
    %cst_24 = arith.constant dense<0.000000e+00> : vector<8x8xf32>
    %60 = tpu.matmul %57, %59, %cst_24 {dimension_numbers = #tpu.dot_dimension_numbers<[1], [0], [0], [1], [0, 0, 1, 1], [], []>} : vector<8x8xbf16>, vector<8x8xbf16>, vector<8x8xf32> -> vector<8x8xf32>
    %61 = vector.extract_strided_slice %50 {offsets = [16, 0], sizes = [8, 8], strides = [1, 1]} : vector<32x8xf32> to vector<8x8xf32>
    %62 = arith.truncf %61 : vector<8x8xf32> to vector<8x8xbf16>
    %63 = vector.extract_strided_slice %17 {offsets = [0, 8], sizes = [8, 8], strides = [1, 1]} : vector<8x16xf32> to vector<8x8xf32>
    %64 = arith.truncf %63 : vector<8x8xf32> to vector<8x8xbf16>
    %cst_25 = arith.constant dense<0.000000e+00> : vector<8x8xf32>
    %65 = tpu.matmul %62, %64, %cst_25 {dimension_numbers = #tpu.dot_dimension_numbers<[1], [0], [0], [1], [0, 0, 1, 1], [], []>} : vector<8x8xbf16>, vector<8x8xbf16>, vector<8x8xf32> -> vector<8x8xf32>
    %66 = vector.extract_strided_slice %50 {offsets = [24, 0], sizes = [8, 8], strides = [1, 1]} : vector<32x8xf32> to vector<8x8xf32>
    %67 = arith.truncf %66 : vector<8x8xf32> to vector<8x8xbf16>
    %68 = vector.extract_strided_slice %17 {offsets = [0, 8], sizes = [8, 8], strides = [1, 1]} : vector<8x16xf32> to vector<8x8xf32>
    %69 = arith.truncf %68 : vector<8x8xf32> to vector<8x8xbf16>
    %cst_26 = arith.constant dense<0.000000e+00> : vector<8x8xf32>
    %70 = tpu.matmul %67, %69, %cst_26 {dimension_numbers = #tpu.dot_dimension_numbers<[1], [0], [0], [1], [0, 0, 1, 1], [], []>} : vector<8x8xbf16>, vector<8x8xbf16>, vector<8x8xf32> -> vector<8x8xf32>
    %71 = tpu.concatenate %55, %60, %65, %70 in 1 : vector<8x8xf32>, vector<8x8xf32>, vector<8x8xf32>, vector<8x8xf32> -> vector<8x32xf32>
    %72 = arith.truncf %71 : vector<8x32xf32> to vector<8x32xbf16>
    %c0_27 = arith.constant 0 : index
    %c0_28 = arith.constant 0 : index
    %73 = vector.load %arg8[%c0_27, %c0_28] : memref<32x32xbf16, #tpu.memory_space<vmem>>, vector<32x32xbf16>
    %cst_29 = arith.constant dense<0.000000e+00> : vector<8x32xf32>
    %74 = tpu.matmul %72, %73, %cst_29 {dimension_numbers = #tpu.dot_dimension_numbers<[1], [0], [0], [1], [0, 0, 1, 1], [], []>} : vector<8x32xbf16>, vector<32x32xbf16>, vector<8x32xf32> -> vector<8x32xf32>
    %c0_30 = arith.constant 0 : index
    %c0_31 = arith.constant 0 : index
    %75 = vector.load %arg9[%c0_30, %c0_31] : memref<1x32xf32, #tpu.memory_space<vmem>>, vector<1x32xf32>
    %76 = vector.broadcast %75 : vector<1x32xf32> to vector<8x32xf32>
    %77 = arith.addf %74, %76 : vector<8x32xf32>
    %c0_32 = arith.constant 0 : index
    %c0_33 = arith.constant 0 : index
    %c0_34 = arith.constant 0 : index
    %78 = vector.load %arg10[%c0_32, %c0_33, %c0_34] : memref<1x8x32xf32, #tpu.memory_space<vmem>>, vector<1x8x32xf32>
    %79 = vector.shape_cast %78 : vector<1x8x32xf32> to vector<8x32xf32>
    %80 = vector.shape_cast %77 : vector<8x32xf32> to vector<1x8x32xf32>
    tpu.vector_store %arg10[%c0_32, %c0_33, %c0_34], %80 {strides = array<i32>} : memref<1x8x32xf32, #tpu.memory_space<vmem>>, vector<1x8x32xf32>,
    return
  }
  func.func @transform_0(%arg0: i32) -> (i32, i32, i32) {
    %c0_i32 = arith.constant 0 : i32
    %c0_i32_0 = arith.constant 0 : i32
    %c0_i32_1 = arith.constant 0 : i32
    return %arg0, %c0_i32, %c0_i32_0 : i32, i32, i32
  }
  func.func @transform_1(%arg0: i32) -> (i32, i32) {
    %c0_i32 = arith.constant 0 : i32
    %c0_i32_0 = arith.constant 0 : i32
    %c0_i32_1 = arith.constant 0 : i32
    return %c0_i32, %c0_i32_0 : i32, i32
  }
  func.func @transform_2(%arg0: i32) -> (i32, i32) {
    %c0_i32 = arith.constant 0 : i32
    %c0_i32_0 = arith.constant 0 : i32
    %c0_i32_1 = arith.constant 0 : i32
    return %c0_i32, %c0_i32_0 : i32, i32
  }
  func.func @transform_3(%arg0: i32) -> (i32, i32) {
    %c0_i32 = arith.constant 0 : i32
    %c0_i32_0 = arith.constant 0 : i32
    %c0_i32_1 = arith.constant 0 : i32
    return %c0_i32, %c0_i32_0 : i32, i32
  }
  func.func @transform_4(%arg0: i32) -> (i32, i32) {
    %c0_i32 = arith.constant 0 : i32
    %c0_i32_0 = arith.constant 0 : i32
    %c0_i32_1 = arith.constant 0 : i32
    return %c0_i32, %c0_i32_0 : i32, i32
  }
  func.func @transform_5(%arg0: i32) -> (i32, i32) {
    %c0_i32 = arith.constant 0 : i32
    %c0_i32_0 = arith.constant 0 : i32
    %c0_i32_1 = arith.constant 0 : i32
    return %c0_i32, %c0_i32_0 : i32, i32
  }
  func.func @transform_6(%arg0: i32) -> (i32, i32) {
    %c0_i32 = arith.constant 0 : i32
    %c0_i32_0 = arith.constant 0 : i32
    %c0_i32_1 = arith.constant 0 : i32
    return %c0_i32, %c0_i32_0 : i32, i32
  }
  func.func @transform_7(%arg0: i32) -> (i32, i32) {
    %c0_i32 = arith.constant 0 : i32
    %c0_i32_0 = arith.constant 0 : i32
    %c0_i32_1 = arith.constant 0 : i32
    return %c0_i32, %c0_i32_0 : i32, i32
  }
  func.func @transform_8(%arg0: i32) -> (i32, i32) {
    %c0_i32 = arith.constant 0 : i32
    %c0_i32_0 = arith.constant 0 : i32
    %c0_i32_1 = arith.constant 0 : i32
    return %c0_i32, %c0_i32_0 : i32, i32
  }
  func.func @transform_9(%arg0: i32) -> (i32, i32, i32) {
    %c0_i32 = arith.constant 0 : i32
    %c0_i32_0 = arith.constant 0 : i32
    %c0_i32_1 = arith.constant 0 : i32
    return %arg0, %c0_i32, %c0_i32_0 : i32, i32, i32
  }
}

</mosaic_0001>

<llo_original>
// kernel: tpu_custom_call.1
$region0: #{tpu_custom_call.1}
  #allocation0 [shape = 'u32[]', space=smem, size = 0x4, offset = 0x4, fixed_abs, tag = 'smem constant byte address 0x4 - core index']
  #allocation1 [shape = 'u32[72,128]{1,0:T(1,128)}', space=vmem, size = 0x9000, scoped, tag = 'internal scratch']
  %s0 = inlined_call_operand.vmem [shape: f32[2,8,32], index: 0, kind: input, shape index: {}]
  %s1 = inlined_call_operand.vmem [shape: bf16[32,32], index: 1, kind: input, shape index: {}]
  %s2 = inlined_call_operand.vmem [shape: f32[1,32], index: 2, kind: input, shape index: {}]
  %s3 = inlined_call_operand.vmem [shape: bf16[32,16], index: 3, kind: input, shape index: {}]
  %s4 = inlined_call_operand.vmem [shape: f32[1,16], index: 4, kind: input, shape index: {}]
  %s5 = inlined_call_operand.vmem [shape: bf16[32,16], index: 5, kind: input, shape index: {}]
  %s6 = inlined_call_operand.vmem [shape: f32[1,16], index: 6, kind: input, shape index: {}]
  %s7 = inlined_call_operand.hbm [shape: bf16[32,32], index: 7, kind: input, shape index: {}]
  %s8 = inlined_call_operand.vmem [shape: f32[1,32], index: 8, kind: input, shape index: {}]
  %s9 = inlined_call_operand.hbm [shape: f32[2,8,32], index: 9, kind: output, shape index: {}]
  %s10 = sld [smem:[#allocation0]]
  $region73: #{tpu_custom_call.1} parent=0
    _
  %s12 = ssub.s32 1, %s10
  %s13 = scalar_select 0, %s12, %s10
  $region1: #{tpu_custom_call.1} parent=0
    #allocation2 [shape = 'u8[8192]{0}', space=vmem, size = 0x2000, scoped, tag = 'input window, operand 7, single buffered']
    #allocation3 [shape = 's32[2]{0}', space=sflag, size = 0x8, scoped, tag = 'scoped memory for tpu_custom_call.1']
    #allocation4 [shape = 's32[2]{0}', space=sflag, size = 0x8, scoped, tag = 'scoped memory for tpu_custom_call.1']
    #allocation5 [shape = 'u8[8192]{0}', space=vmem, size = 0x2000, scoped, tag = 'output window, operand 0']
    %14 = vsyncpa [#allocation3], 0
    %15 = vsyncpa [#allocation4], 0
    %s16 = scalar_lea.sflag [#allocation4], 1
    %17 = vsyncpa %s16, 0
    loop: start=0, step=1, limit=4
    $region2: #{tpu_custom_call.1} parent=1 // loop_pre_header
      _
    $region3: #{tpu_custom_call.1} parent=1 // loop_header
      %s19 = sphi 0, %s23
      %p20 = scmp.ge.s32.totalorder %s19, 4
      %s29 = sphi 0, %s31
      %s32 = sphi 0, %s29
      %s33 = sphi 0, %s32
      %s49 = sphi 0, %s33
      %s53 = sphi 0, %s53
      %s55 = sphi 0, %s53
      %s56 = sphi 0, %s55
      %s70 = sphi 0, %s56
      %s74 = sphi 0, %s74
      %s76 = sphi 0, %s74
      %s77 = sphi 0, %s76
      %s91 = sphi 0, %s77
      %s95 = sphi 0, %s95
      %s97 = sphi 0, %s95
      %s98 = sphi 0, %s97
      %s112 = sphi 0, %s98
      %s116 = sphi 0, %s116
      %s118 = sphi 0, %s116
      %s119 = sphi 0, %s118
      %s133 = sphi 0, %s119
      %s137 = sphi 0, %s137
      %s139 = sphi 0, %s137
      %s140 = sphi 0, %s139
      %s154 = sphi 0, %s140
      %s158 = sphi 0, %s158
      %s160 = sphi 0, %s158
      %s161 = sphi 0, %s160
      %s175 = sphi 0, %s161
      %s179 = sphi 0, %s179
      %s181 = sphi 0, %s179
      %s182 = sphi 0, %s181
      %s196 = sphi 0, %s182
      %s200 = sphi 0, %s200
      %s202 = sphi 0, %s200
      %s203 = sphi 0, %s202
      %s217 = sphi 0, %s203
      %s223 = sphi 0, %s225
      %s226 = sphi 0, %s223
      %s227 = sphi 0, %s226
      %s243 = sphi 0, %s227
    $region4: #{tpu_custom_call.1} parent=1 // loop_header_branch
      %22 = sbr.rel (%p20) target = $region8
    $region5: #{tpu_custom_call.1} parent=1 // loop_body
      %s24 = ssub.s32 %s19, 1
      %s25 = ssub.s32 %s19, 2
      %s26 = sadd.s32 %s19, 1
      %s27 = ssub.s32 %s19, %s26
      %p28 = scmp.eq.s32.totalorder %s27, 0
      %s30 = sadd.s32 %s29, 1
      %s31 = scalar_select %p28, %s29, %s30
      %p34 = pneg %p28
      %p35 = scmp.eq.s32.totalorder %s19, 1
      %p36 = por %p34, %p35
      %p37 = scmp.ne.s32.totalorder %s29, %s32
      %p38 = scmp.eq.s32.totalorder %s19, 0
      %p39 = por %p37, %p38
      %p40 = scmp.ne.s32.totalorder %s29, %s32
      %p41 = scmp.eq.s32.totalorder %s24, 1
      %p42 = por %p40, %p41
      %p43 = scmp.ne.s32.totalorder %s32, %s33
      %p44 = scmp.eq.s32.totalorder %s24, 0
      %p45 = por %p43, %p44
      %p46 = scmp.ne.s32.totalorder %s32, %s33
      %p47 = scmp.eq.s32.totalorder %s25, 1
      %p48 = por %p46, %p47
      %p50 = scmp.ne.s32.totalorder %s33, %s49
      %p51 = scmp.eq.s32.totalorder %s25, 0
      %p52 = por %p50, %p51
      %s54 = sadd.s32 %s53, 1
      %p57 = scmp.eq.s32.totalorder %s19, 1
      %p58 = scmp.ne.s32.totalorder %s53, %s55
      %p59 = scmp.eq.s32.totalorder %s19, 0
      %p60 = por %p58, %p59
      %p61 = scmp.ne.s32.totalorder %s53, %s55
      %p62 = scmp.eq.s32.totalorder %s24, 1
      %p63 = por %p61, %p62
      %p64 = scmp.ne.s32.totalorder %s55, %s56
      %p65 = scmp.eq.s32.totalorder %s24, 0
      %p66 = por %p64, %p65
      %p67 = scmp.ne.s32.totalorder %s55, %s56
      %p68 = scmp.eq.s32.totalorder %s25, 1
      %p69 = por %p67, %p68
      %p71 = scmp.ne.s32.totalorder %s56, %s70
      %p72 = scmp.eq.s32.totalorder %s25, 0
      %p73 = por %p71, %p72
      %s75 = sadd.s32 %s74, 1
      %p78 = scmp.eq.s32.totalorder %s19, 1
      %p79 = scmp.ne.s32.totalorder %s74, %s76
      %p80 = scmp.eq.s32.totalorder %s19, 0
      %p81 = por %p79, %p80
      %p82 = scmp.ne.s32.totalorder %s74, %s76
      %p83 = scmp.eq.s32.totalorder %s24, 1
      %p84 = por %p82, %p83
      %p85 = scmp.ne.s32.totalorder %s76, %s77
      %p86 = scmp.eq.s32.totalorder %s24, 0
      %p87 = por %p85, %p86
      %p88 = scmp.ne.s32.totalorder %s76, %s77
      %p89 = scmp.eq.s32.totalorder %s25, 1
      %p90 = por %p88, %p89
      %p92 = scmp.ne.s32.totalorder %s77, %s91
      %p93 = scmp.eq.s32.totalorder %s25, 0
      %p94 = por %p92, %p93
      %s96 = sadd.s32 %s95, 1
      %p99 = scmp.eq.s32.totalorder %s19, 1
      %p100 = scmp.ne.s32.totalorder %s95, %s97
      %p101 = scmp.eq.s32.totalorder %s19, 0
      %p102 = por %p100, %p101
      %p103 = scmp.ne.s32.totalorder %s95, %s97
      %p104 = scmp.eq.s32.totalorder %s24, 1
      %p105 = por %p103, %p104
      %p106 = scmp.ne.s32.totalorder %s97, %s98
      %p107 = scmp.eq.s32.totalorder %s24, 0
      %p108 = por %p106, %p107
      %p109 = scmp.ne.s32.totalorder %s97, %s98
      %p110 = scmp.eq.s32.totalorder %s25, 1
      %p111 = por %p109, %p110
      %p113 = scmp.ne.s32.totalorder %s98, %s112
      %p114 = scmp.eq.s32.totalorder %s25, 0
      %p115 = por %p113, %p114
      %s117 = sadd.s32 %s116, 1
      %p120 = scmp.eq.s32.totalorder %s19, 1
      %p121 = scmp.ne.s32.totalorder %s116, %s118
      %p122 = scmp.eq.s32.totalorder %s19, 0
      %p123 = por %p121, %p122
      %p124 = scmp.ne.s32.totalorder %s116, %s118
      %p125 = scmp.eq.s32.totalorder %s24, 1
      %p126 = por %p124, %p125
      %p127 = scmp.ne.s32.totalorder %s118, %s119
      %p128 = scmp.eq.s32.totalorder %s24, 0
      %p129 = por %p127, %p128
      %p130 = scmp.ne.s32.totalorder %s118, %s119
      %p131 = scmp.eq.s32.totalorder %s25, 1
      %p132 = por %p130, %p131
      %p134 = scmp.ne.s32.totalorder %s119, %s133
      %p135 = scmp.eq.s32.totalorder %s25, 0
      %p136 = por %p134, %p135
      %s138 = sadd.s32 %s137, 1
      %p141 = scmp.eq.s32.totalorder %s19, 1
      %p142 = scmp.ne.s32.totalorder %s137, %s139
      %p143 = scmp.eq.s32.totalorder %s19, 0
      %p144 = por %p142, %p143
      %p145 = scmp.ne.s32.totalorder %s137, %s139
      %p146 = scmp.eq.s32.totalorder %s24, 1
      %p147 = por %p145, %p146
      %p148 = scmp.ne.s32.totalorder %s139, %s140
      %p149 = scmp.eq.s32.totalorder %s24, 0
      %p150 = por %p148, %p149
      %p151 = scmp.ne.s32.totalorder %s139, %s140
      %p152 = scmp.eq.s32.totalorder %s25, 1
      %p153 = por %p151, %p152
      %p155 = scmp.ne.s32.totalorder %s140, %s154
      %p156 = scmp.eq.s32.totalorder %s25, 0
      %p157 = por %p155, %p156
      %s159 = sadd.s32 %s158, 1
      %p162 = scmp.eq.s32.totalorder %s19, 1
      %p163 = scmp.ne.s32.totalorder %s158, %s160
      %p164 = scmp.eq.s32.totalorder %s19, 0
      %p165 = por %p163, %p164
      %p166 = scmp.ne.s32.totalorder %s158, %s160
      %p167 = scmp.eq.s32.totalorder %s24, 1
      %p168 = por %p166, %p167
      %p169 = scmp.ne.s32.totalorder %s160, %s161
      %p170 = scmp.eq.s32.totalorder %s24, 0
      %p171 = por %p169, %p170
      %p172 = scmp.ne.s32.totalorder %s160, %s161
      %p173 = scmp.eq.s32.totalorder %s25, 1
      %p174 = por %p172, %p173
      %p176 = scmp.ne.s32.totalorder %s161, %s175
      %p177 = scmp.eq.s32.totalorder %s25, 0
      %p178 = por %p176, %p177
      %s180 = sadd.s32 %s179, 1
      %p183 = scmp.eq.s32.totalorder %s19, 1
      %p184 = scmp.ne.s32.totalorder %s179, %s181
      %p185 = scmp.eq.s32.totalorder %s19, 0
      %p186 = por %p184, %p185
      %p187 = scmp.ne.s32.totalorder %s179, %s181
      %p188 = scmp.eq.s32.totalorder %s24, 1
      %p189 = por %p187, %p188
      %p190 = scmp.ne.s32.totalorder %s181, %s182
      %p191 = scmp.eq.s32.totalorder %s24, 0
      %p192 = por %p190, %p191
      %p193 = scmp.ne.s32.totalorder %s181, %s182
      %p194 = scmp.eq.s32.totalorder %s25, 1
      %p195 = por %p193, %p194
      %p197 = scmp.ne.s32.totalorder %s182, %s196
      %p198 = scmp.eq.s32.totalorder %s25, 0
      %p199 = por %p197, %p198
      %s201 = sadd.s32 %s200, 1
      %p204 = scmp.eq.s32.totalorder %s19, 1
      %p205 = scmp.ne.s32.totalorder %s200, %s202
      %p206 = scmp.eq.s32.totalorder %s19, 0
      %p207 = por %p205, %p206
      %p208 = scmp.ne.s32.totalorder %s200, %s202
      %p209 = scmp.eq.s32.totalorder %s24, 1
      %p210 = por %p208, %p209
      %p211 = scmp.ne.s32.totalorder %s202, %s203
      %p212 = scmp.eq.s32.totalorder %s24, 0
      %p213 = por %p211, %p212
      %p214 = scmp.ne.s32.totalorder %s202, %s203
      %p215 = scmp.eq.s32.totalorder %s25, 1
      %p216 = por %p214, %p215
      %p218 = scmp.ne.s32.totalorder %s203, %s217
      %p219 = scmp.eq.s32.totalorder %s25, 0
      %p220 = por %p218, %p219
      %s221 = ssub.s32 %s19, %s26
      %p222 = scmp.eq.s32.totalorder %s221, 0
      %s224 = sadd.s32 %s223, 1
      %s225 = scalar_select %p222, %s223, %s224
      %p228 = pneg %p222
      %p229 = scmp.eq.s32.totalorder %s19, 1
      %p230 = por %p228, %p229
      %p231 = scmp.ne.s32.totalorder %s223, %s226
      %p232 = scmp.eq.s32.totalorder %s19, 0
      %p233 = por %p231, %p232
      %p234 = scmp.ne.s32.totalorder %s223, %s226
      %p235 = scmp.eq.s32.totalorder %s24, 1
      %p236 = por %p234, %p235
      %p237 = scmp.ne.s32.totalorder %s226, %s227
      %p238 = scmp.eq.s32.totalorder %s24, 0
      %p239 = por %p237, %p238
      %p240 = scmp.ne.s32.totalorder %s226, %s227
      %p241 = scmp.eq.s32.totalorder %s25, 1
      %p242 = por %p240, %p241
      %p244 = scmp.ne.s32.totalorder %s227, %s243
      %p245 = scmp.eq.s32.totalorder %s25, 0
      %p246 = por %p244, %p245
      %p247 = scmp.le.s32.totalorder 1, %s19
      %p248 = scmp.lt.s32.totalorder %s19, 3
      %p249 = pnand %p247, %p248
      %p250 = pneg %p249
      // Predicated region
      $region9: #{tpu_custom_call.1} parent=5 // pred_check
        _
      $region10: #{tpu_custom_call.1} parent=5 // pred_check_branch
        %252 = sbr.rel (%p249) target = $region12
      $region11: #{tpu_custom_call.1} parent=5 // pred_region
        %s253 = ssub.s32 %s19, 1
        // Predicated region
        $region13: #{tpu_custom_call.1} parent=11 // pred_check
          %p254 = pneg %p66
        $region14: #{tpu_custom_call.1} parent=11 // pred_check_branch
          %256 = sbr.rel (%p254) target = $region16
        $region15: #{tpu_custom_call.1} parent=11 // pred_region
          _
        $region16: #{tpu_custom_call.1} parent=11 // pred_fallthru
          _
        // Predicated region
        $region17: #{tpu_custom_call.1} parent=11 // pred_check
          %p257 = pneg %p87
        $region18: #{tpu_custom_call.1} parent=11 // pred_check_branch
          %259 = sbr.rel (%p257) target = $region20
        $region19: #{tpu_custom_call.1} parent=11 // pred_region
          _
        $region20: #{tpu_custom_call.1} parent=11 // pred_fallthru
          _
        // Predicated region
        $region21: #{tpu_custom_call.1} parent=11 // pred_check
          %p260 = pneg %p108
        $region22: #{tpu_custom_call.1} parent=11 // pred_check_branch
          %262 = sbr.rel (%p260) target = $region24
        $region23: #{tpu_custom_call.1} parent=11 // pred_region
          _
        $region24: #{tpu_custom_call.1} parent=11 // pred_fallthru
          _
        // Predicated region
        $region25: #{tpu_custom_call.1} parent=11 // pred_check
          %p263 = pneg %p129
        $region26: #{tpu_custom_call.1} parent=11 // pred_check_branch
          %265 = sbr.rel (%p263) target = $region28
        $region27: #{tpu_custom_call.1} parent=11 // pred_region
          _
        $region28: #{tpu_custom_call.1} parent=11 // pred_fallthru
          _
        // Predicated region
        $region29: #{tpu_custom_call.1} parent=11 // pred_check
          %p266 = pneg %p150
        $region30: #{tpu_custom_call.1} parent=11 // pred_check_branch
          %268 = sbr.rel (%p266) target = $region32
        $region31: #{tpu_custom_call.1} parent=11 // pred_region
          _
        $region32: #{tpu_custom_call.1} parent=11 // pred_fallthru
          _
        // Predicated region
        $region33: #{tpu_custom_call.1} parent=11 // pred_check
          %p269 = pneg %p171
        $region34: #{tpu_custom_call.1} parent=11 // pred_check_branch
          %271 = sbr.rel (%p269) target = $region36
        $region35: #{tpu_custom_call.1} parent=11 // pred_region
          _
        $region36: #{tpu_custom_call.1} parent=11 // pred_fallthru
          _
        // Predicated region
        $region37: #{tpu_custom_call.1} parent=11 // pred_check
          %p272 = pneg %p192
        $region38: #{tpu_custom_call.1} parent=11 // pred_check_branch
          %274 = sbr.rel (%p272) target = $region40
        $region39: #{tpu_custom_call.1} parent=11 // pred_region
          %276 = vsyncadd [#allocation3], 0
          %s277 = sshll.u32 %s7, 4
          %s278 = int_to_ptr.hbm [resolvable:$true] %s277
          %s279 = sshll.u32 [#allocation2], 4
          %s280 = int_to_ptr.vmem [resolvable:$true] %s279
          %285 = dma.hbm_to_vmem [thread:$0]  %s278, 256, %s280, [#allocation3], 64, 64, 4
        $region40: #{tpu_custom_call.1} parent=11 // pred_fallthru
          _
        // Predicated region
        $region41: #{tpu_custom_call.1} parent=11 // pred_check
          %p286 = pneg %p213
        $region42: #{tpu_custom_call.1} parent=11 // pred_check_branch
          %288 = sbr.rel (%p286) target = $region44
        $region43: #{tpu_custom_call.1} parent=11 // pred_region
          _
        $region44: #{tpu_custom_call.1} parent=11 // pred_fallthru
          _
      $region12: #{tpu_custom_call.1} parent=5 // pred_fallthru
        _
      %p289 = scmp.lt.s32.totalorder %s19, 2
      // Predicated region
      $region45: #{tpu_custom_call.1} parent=5 // pred_check
        %p290 = pneg %p289
      $region46: #{tpu_custom_call.1} parent=5 // pred_check_branch
        %292 = sbr.rel (%p290) target = $region48
      $region47: #{tpu_custom_call.1} parent=5 // pred_region
        // Predicated region
        $region49: #{tpu_custom_call.1} parent=47 // pred_check
          %p293 = pneg %p39
        $region50: #{tpu_custom_call.1} parent=47 // pred_check_branch
          %295 = sbr.rel (%p293) target = $region52
        $region51: #{tpu_custom_call.1} parent=47 // pred_region
          %p296 = scmp.lt.s32.totalorder %s19, 1
          %s297 = scalar_select %p296, %s19, 1
          %s298 = smul.addr %s297, 8
          %s299 = scalar_lea.vmem %s0, %s298
        $region52: #{tpu_custom_call.1} parent=47 // pred_fallthru
          _
      $region48: #{tpu_custom_call.1} parent=5 // pred_fallthru
        _
      %p300 = scmp.le.s32.totalorder 1, %s19
      %p301 = scmp.lt.s32.totalorder %s19, 3
      %p302 = pnand %p300, %p301
      %p303 = pneg %p302
      // Predicated region
      $region53: #{tpu_custom_call.1} parent=5 // pred_check
        _
      $region54: #{tpu_custom_call.1} parent=5 // pred_check_branch
        %305 = sbr.rel (%p302) target = $region56
      $region55: #{tpu_custom_call.1} parent=5 // pred_region
        %s306 = ssub.s32 %s19, 1
        // Predicated region
        $region57: #{tpu_custom_call.1} parent=55 // pred_check
          %p307 = pneg %p192
        $region58: #{tpu_custom_call.1} parent=55 // pred_check_branch
          %309 = sbr.rel (%p307) target = $region60
        $region59: #{tpu_custom_call.1} parent=55 // pred_region
          %311 = dma.done [#allocation3], 256
        $region60: #{tpu_custom_call.1} parent=55 // pred_fallthru
          _
        %p312 = scmp.lt.s32.totalorder %s24, 1
        %s313 = scalar_select %p312, %s24, 1
        %s314 = smul.addr %s313, 8
        %s315 = scalar_lea.vmem %s0, %s314
        %p316 = pneg %p45
        %p317 = pneg %p42
        %p318 = pneg %p66
        %p319 = pneg %p63
        %p320 = pneg %p87
        %p321 = pneg %p84
        %p322 = pneg %p108
        %p323 = pneg %p105
        %p324 = pneg %p129
        %p325 = pneg %p126
        %p326 = pneg %p150
        %p327 = pneg %p147
        %p328 = pneg %p171
        %p329 = pneg %p168
        %p330 = pneg %p192
        %p331 = pneg %p189
        %p332 = pneg %p213
        %p333 = pneg %p210
        %p334 = pneg %p239
        %p335 = pneg %p236
        %s336 = sand.u32 %s226, 1
        %s337 = scalar_lea.sflag [#allocation4], %s336
        %s338 = sand.u32 %s226, 1
        %s339 = smul.addr %s338, 8
        %s340 = scalar_lea.vmem [#allocation5], %s339
        %p341 = scmp.lt.s32.totalorder %s24, 1
        %s342 = scalar_select %p341, %s24, 1
        %s343 = smul.addr %s342, 8
        %s344 = scalar_lea.vmem %s0, %s343
        %v346 = vld [vmem:[%s344] sm:$0xff]
        %v347 = vpack.c.bf16 %v346, %v346
        %v348 = vld [vmem:[%s1] sm:$0xf]
        %v349 = vld [vmem:[%s1 + $0x4] sm:$0xf]
        %v350 = vld [vmem:[%s1 + $0x8] sm:$0xf]
        %v351 = vld [vmem:[%s1 + $0xc] sm:$0xf]
        %v352 = vld [vmem:[%s2] sm:$0x1]
        %v354 = vperm.slane %v352, 0
        %v360 = vunpack.c.l.b16 %v348
        %v361 = vunpack.c.l.b16 %v349
        %v362 = vunpack.c.l.b16 %v350
        %v363 = vunpack.c.l.b16 %v351
        %v364 = vpack.c.b16 %v361, %v360
        %v365 = vpack.c.b16 %v363, %v362
        %vm368 = vcmask 261120
        %v370 = vsel %vm368, %v347, 0
        %372 = vmatpush.bf16.msra.mxu0 0
        %373 = vmatpush.bf16.msra.mxu0 0
        %374 = vmatpush.bf16.msra.mxu0 0
        %375 = vmatpush.bf16.msra.mxu0 0
        %376 = vmatpush.bf16.msra.mxu0 0
        %377 = vmatpush.bf16.msra.mxu0 0
        %378 = vmatpush.bf16.msra.mxu0 %v365
        %379 = vmatpush.bf16.msra.mxu0 %v364
        %380 = vmatmul.bf16.gmra.mxu0 %v370
        %v381 = vpop.f32.mrf.mxu0
        %v382 = vadd.f32 %v354, %v381
        %v383 = vpop.f32.mrf.mxu0
        %384 = vdwg.mxu0
        %v385 = vld [vmem:[%s3] sm:$0xf]
        %v386 = vld [vmem:[%s3 + $0x4] sm:$0xf]
        %v387 = vld [vmem:[%s3 + $0x8] sm:$0xf]
        %v388 = vld [vmem:[%s3 + $0xc] sm:$0xf]
        %v389 = vld [vmem:[%s4] sm:$0x1]
        %v391 = vperm.slane %v389, 0
        %v397 = vunpack.c.l.b16 %v385
        %v398 = vunpack.c.l.b16 %v386
        %v399 = vunpack.c.l.b16 %v387
        %v400 = vunpack.c.l.b16 %v388
        %v401 = vpack.c.b16 %v398, %v397
        %v402 = vpack.c.b16 %v400, %v399
        %405 = vmatpush.bf16.msra.mxu0 0
        %406 = vmatpush.bf16.msra.mxu0 0
        %407 = vmatpush.bf16.msra.mxu0 0
        %408 = vmatpush.bf16.msra.mxu0 0
        %409 = vmatpush.bf16.msra.mxu0 0
        %410 = vmatpush.bf16.msra.mxu0 0
        %411 = vmatpush.bf16.msra.mxu0 %v402
        %412 = vmatpush.bf16.msra.mxu0 %v401
        %413 = vmatmul.bf16.gmra.mxu0 %v370
        %v414 = vpop.f32.mrf.mxu0
        %v415 = vadd.f32 %v391, %v414
        %v416 = vpop.f32.mrf.mxu0
        %417 = vdwg.mxu0
        %v418 = vld [vmem:[%s5] sm:$0xf]
        %v419 = vld [vmem:[%s5 + $0x4] sm:$0xf]
        %v420 = vld [vmem:[%s5 + $0x8] sm:$0xf]
        %v421 = vld [vmem:[%s5 + $0xc] sm:$0xf]
        %v422 = vld [vmem:[%s6] sm:$0x1]
        %v424 = vperm.slane %v422, 0
        %v430 = vunpack.c.l.b16 %v418
        %v431 = vunpack.c.l.b16 %v419
        %v432 = vunpack.c.l.b16 %v420
        %v433 = vunpack.c.l.b16 %v421
        %v434 = vpack.c.b16 %v431, %v430
        %v435 = vpack.c.b16 %v433, %v432
        %438 = vmatpush.bf16.msra.mxu0 0
        %439 = vmatpush.bf16.msra.mxu0 0
        %440 = vmatpush.bf16.msra.mxu0 0
        %441 = vmatpush.bf16.msra.mxu0 0
        %442 = vmatpush.bf16.msra.mxu0 0
        %443 = vmatpush.bf16.msra.mxu0 0
        %444 = vmatpush.bf16.msra.mxu0 %v435
        %445 = vmatpush.bf16.msra.mxu0 %v434
        %446 = vmatmul.bf16.gmra.mxu0 %v370
        %v447 = vpop.f32.mrf.mxu0
        %v448 = vadd.f32 %v424, %v447
        %v449 = vpop.f32.mrf.mxu0
        %450 = vdwg.mxu0
        %v451 = vmul.f32 %v382, 0.35355338
        %v452 = vpack.c.bf16 %v451, %v451
        %v453 = vpack.c.bf16 %v415, %v415
        %vm454 = vcmask 64512
        %v456 = vsel %vm454, %v452, 0
        %v459 = vsel %vm454, %v453, 0
        %461 = vmatpush.bf16.xpose.msra.mxu0 0
        %462 = vmatpush.bf16.xpose.msra.mxu0 0
        %463 = vmatpush.bf16.xpose.msra.mxu0 0
        %464 = vmatpush.bf16.xpose.msra.mxu0 0
        %465 = vmatpush.bf16.xpose.msra.mxu0 0
        %466 = vmatpush.bf16.xpose.msra.mxu0 0
        %467 = vmatpush.bf16.xpose.msra.mxu0 0
        %468 = vmatpush.bf16.xpose.msra.mxu0 %v459
        %469 = vmatmul.bf16.gmra.mxu0 %v456
        %v470 = vpop.f32.mrf.mxu0
        %v471 = vadd.f32 0.0, %v470
        %v472 = vpop.f32.mrf.mxu0
        %473 = vdwg.mxu0
        %475 = vrot.lane.b32.xlu0 %v452, 120
        %v476 = vpop.permute.xlu0 %475
        %v478 = vsel %vm454, %v476, 0
        %480 = vmatpush.bf16.xpose.msra.mxu0 0
        %481 = vmatpush.bf16.xpose.msra.mxu0 0
        %482 = vmatpush.bf16.xpose.msra.mxu0 0
        %483 = vmatpush.bf16.xpose.msra.mxu0 0
        %484 = vmatpush.bf16.xpose.msra.mxu0 0
        %485 = vmatpush.bf16.xpose.msra.mxu0 0
        %486 = vmatpush.bf16.xpose.msra.mxu0 0
        %487 = vmatpush.bf16.xpose.msra.mxu0 %v459
        %488 = vmatmul.bf16.gmra.mxu0 %v478
        %v489 = vpop.f32.mrf.mxu0
        %v490 = vadd.f32 0.0, %v489
        %v491 = vpop.f32.mrf.mxu0
        %492 = vdwg.mxu0
        %493 = vrot.lane.b32.xlu0 %v452, 112
        %v494 = vpop.permute.xlu0 %493
        %496 = vrot.lane.b32.xlu0 %v453, 120
        %v497 = vpop.permute.xlu0 %496
        %v499 = vsel %vm454, %v494, 0
        %v502 = vsel %vm454, %v497, 0
        %504 = vmatpush.bf16.xpose.msra.mxu0 0
        %505 = vmatpush.bf16.xpose.msra.mxu0 0
        %506 = vmatpush.bf16.xpose.msra.mxu0 0
        %507 = vmatpush.bf16.xpose.msra.mxu0 0
        %508 = vmatpush.bf16.xpose.msra.mxu0 0
        %509 = vmatpush.bf16.xpose.msra.mxu0 0
        %510 = vmatpush.bf16.xpose.msra.mxu0 0
        %511 = vmatpush.bf16.xpose.msra.mxu0 %v502
        %512 = vmatmul.bf16.gmra.mxu0 %v499
        %v513 = vpop.f32.mrf.mxu0
        %v514 = vadd.f32 0.0, %v513
        %v515 = vpop.f32.mrf.mxu0
        %516 = vdwg.mxu0
        %517 = vrot.lane.b32.xlu0 %v452, 104
        %v518 = vpop.permute.xlu0 %517
        %v520 = vsel %vm454, %v518, 0
        %522 = vmatpush.bf16.xpose.msra.mxu0 0
        %523 = vmatpush.bf16.xpose.msra.mxu0 0
        %524 = vmatpush.bf16.xpose.msra.mxu0 0
        %525 = vmatpush.bf16.xpose.msra.mxu0 0
        %526 = vmatpush.bf16.xpose.msra.mxu0 0
        %527 = vmatpush.bf16.xpose.msra.mxu0 0
        %528 = vmatpush.bf16.xpose.msra.mxu0 0
        %529 = vmatpush.bf16.xpose.msra.mxu0 %v502
        %530 = vmatmul.bf16.gmra.mxu0 %v520
        %v531 = vpop.f32.mrf.mxu0
        %v532 = vadd.f32 0.0, %v531
        %v533 = vpop.f32.mrf.mxu0
        %534 = vdwg.mxu0
        %v535 = vsel %vm454, %v471, -inf
        %536 = vmax.xlane.f32.xlu0 %v535
        %v537 = vpop.xlane.xlu0 %536
        %v538 = vsel %vm454, %v490, -inf
        %539 = vmax.xlane.f32.xlu0 %v538
        %v540 = vpop.xlane.xlu0 %539
        %v541 = vsel %vm454, %v514, -inf
        %542 = vmax.xlane.f32.xlu0 %v541
        %v543 = vpop.xlane.xlu0 %542
        %v544 = vsel %vm454, %v532, -inf
        %545 = vmax.xlane.f32.xlu0 %v544
        %v546 = vpop.xlane.xlu0 %545
        %v547 = vsub.f32 %v471, %v537
        %v548 = vsub.f32 %v490, %v540
        %v549 = vsub.f32 %v514, %v543
        %v550 = vsub.f32 %v532, %v546
        %v551 = vmul.f32 %v547, 1.442695
        %v552 = vpow.pop %v551
        %v553 = vmul.f32 %v548, 1.442695
        %v554 = vpow.pop %v553
        %v555 = vmul.f32 %v549, 1.442695
        %v556 = vpow.pop %v555
        %v557 = vmul.f32 %v550, 1.442695
        %v558 = vpow.pop %v557
        %v559 = vsel %vm454, %v552, 0.0
        %560 = vadd.xlane.f32.xlu0 %v559
        %v561 = vpop.xlane.xlu0 %560
        %v562 = vsel %vm454, %v554, 0.0
        %563 = vadd.xlane.f32.xlu0 %v562
        %v564 = vpop.xlane.xlu0 %563
        %v565 = vsel %vm454, %v556, 0.0
        %566 = vadd.xlane.f32.xlu0 %v565
        %v567 = vpop.xlane.xlu0 %566
        %v568 = vsel %vm454, %v558, 0.0
        %569 = vadd.xlane.f32.xlu0 %v568
        %v570 = vpop.xlane.xlu0 %569
        %v571 = vrcp.pop %v561
        %v572 = vrcp.pop %v564
        %v573 = vrcp.pop %v567
        %v574 = vrcp.pop %v570
        %v575 = vmul.f32 %v552, %v571
        %v576 = vmul.f32 %v554, %v572
        %v577 = vmul.f32 %v556, %v573
        %v578 = vmul.f32 %v558, %v574
        %v579 = vpack.c.bf16 %v575, %v575
        %v580 = vpack.c.bf16 %v448, %v448
        %v582 = vsel %vm454, %v579, 0
        %vm584 = vcmask 1043456
        %v586 = vsel %vm584, %v580, 0
        %588 = vmatpush.bf16.msra.mxu0 0
        %589 = vmatpush.bf16.msra.mxu0 0
        %590 = vmatpush.bf16.msra.mxu0 0
        %591 = vmatpush.bf16.msra.mxu0 0
        %592 = vmatpush.bf16.msra.mxu0 0
        %593 = vmatpush.bf16.msra.mxu0 0
        %594 = vmatpush.bf16.msra.mxu0 0
        %595 = vmatpush.bf16.msra.mxu0 %v586
        %596 = vmatmul.bf16.gmra.mxu0 %v582
        %v597 = vpop.f32.mrf.mxu0
        %v598 = vadd.f32 0.0, %v597
        %v599 = vpop.f32.mrf.mxu0
        %600 = vdwg.mxu0
        %v601 = vpack.c.bf16 %v576, %v576
        %v603 = vsel %vm454, %v601, 0
        %605 = vmatpush.bf16.msra.mxu0 0
        %606 = vmatpush.bf16.msra.mxu0 0
        %607 = vmatpush.bf16.msra.mxu0 0
        %608 = vmatpush.bf16.msra.mxu0 0
        %609 = vmatpush.bf16.msra.mxu0 0
        %610 = vmatpush.bf16.msra.mxu0 0
        %611 = vmatpush.bf16.msra.mxu0 0
        %612 = vmatpush.bf16.msra.mxu0 %v586
        %613 = vmatmul.bf16.gmra.mxu0 %v603
        %v614 = vpop.f32.mrf.mxu0
        %v615 = vadd.f32 0.0, %v614
        %v616 = vpop.f32.mrf.mxu0
        %617 = vdwg.mxu0
        %v618 = vpack.c.bf16 %v577, %v577
        %620 = vrot.lane.b32.xlu0 %v580, 120
        %v621 = vpop.permute.xlu0 %620
        %v623 = vsel %vm454, %v618, 0
        %v626 = vsel %vm584, %v621, 0
        %628 = vmatpush.bf16.msra.mxu0 0
        %629 = vmatpush.bf16.msra.mxu0 0
        %630 = vmatpush.bf16.msra.mxu0 0
        %631 = vmatpush.bf16.msra.mxu0 0
        %632 = vmatpush.bf16.msra.mxu0 0
        %633 = vmatpush.bf16.msra.mxu0 0
        %634 = vmatpush.bf16.msra.mxu0 0
        %635 = vmatpush.bf16.msra.mxu0 %v626
        %636 = vmatmul.bf16.gmra.mxu0 %v623
        %v637 = vpop.f32.mrf.mxu0
        %v638 = vadd.f32 0.0, %v637
        %v639 = vpop.f32.mrf.mxu0
        %640 = vdwg.mxu0
        %v641 = vpack.c.bf16 %v578, %v578
        %v643 = vsel %vm454, %v641, 0
        %645 = vmatpush.bf16.msra.mxu0 0
        %646 = vmatpush.bf16.msra.mxu0 0
        %647 = vmatpush.bf16.msra.mxu0 0
        %648 = vmatpush.bf16.msra.mxu0 0
        %649 = vmatpush.bf16.msra.mxu0 0
        %650 = vmatpush.bf16.msra.mxu0 0
        %651 = vmatpush.bf16.msra.mxu0 0
        %652 = vmatpush.bf16.msra.mxu0 %v626
        %653 = vmatmul.bf16.gmra.mxu0 %v643
        %v654 = vpop.f32.mrf.mxu0
        %v655 = vadd.f32 0.0, %v654
        %v656 = vpop.f32.mrf.mxu0
        %657 = vdwg.mxu0
        %659 = vrot.lane.b32.xlu0 %v615, 8
        %v660 = vpop.permute.xlu0 %659
        %663 = vrot.lane.b32.xlu0 %v638, 16
        %v664 = vpop.permute.xlu0 %663
        %667 = vrot.lane.b32.xlu0 %v655, 24
        %v668 = vpop.permute.xlu0 %667
        %v670 = vsel %vm454, %v598, %v660
        %vm671 = vcmask 130048
        %v672 = vsel %vm671, %v670, %v664
        %vm673 = vcmask 195584
        %v674 = vsel %vm673, %v672, %v668
        %v675 = vpack.c.bf16 %v674, %v674
        %v676 = vld [vmem:[#allocation2] sm:$0xf]
        %v677 = vld [vmem:[#allocation2 + $0x4] sm:$0xf]
        %v678 = vld [vmem:[#allocation2 + $0x8] sm:$0xf]
        %v679 = vld [vmem:[#allocation2 + $0xc] sm:$0xf]
        %v680 = vld [vmem:[%s8] sm:$0x1]
        %v682 = vperm.slane %v680, 0
        %v688 = vunpack.c.l.b16 %v676
        %v689 = vunpack.c.l.b16 %v677
        %v690 = vunpack.c.l.b16 %v678
        %v691 = vunpack.c.l.b16 %v679
        %v692 = vpack.c.b16 %v689, %v688
        %v693 = vpack.c.b16 %v691, %v690
        %v697 = vsel %vm368, %v675, 0
        %699 = vmatpush.bf16.msra.mxu0 0
        %700 = vmatpush.bf16.msra.mxu0 0
        %701 = vmatpush.bf16.msra.mxu0 0
        %702 = vmatpush.bf16.msra.mxu0 0
        %703 = vmatpush.bf16.msra.mxu0 0
        %704 = vmatpush.bf16.msra.mxu0 0
        %705 = vmatpush.bf16.msra.mxu0 %v693
        %706 = vmatpush.bf16.msra.mxu0 %v692
        %707 = vmatmul.bf16.gmra.mxu0 %v697
        %v708 = vpop.f32.mrf.mxu0
        %v709 = vadd.f32 %v682, %v708
        %v710 = vpop.f32.mrf.mxu0
        %711 = vdwg.mxu0
        %712 = vst.msk [vmem:[%s340] sm:$0xff] %vm368, %v709
        %s713 = sand.u32 %s226, 1
        %s714 = scalar_lea.sflag [#allocation4], %s713
        %s715 = sand.u32 %s226, 1
        %s716 = smul.addr %s715, 8
        %s717 = scalar_lea.vmem [#allocation5], %s716
        // Predicated region
        $region61: #{tpu_custom_call.1} parent=55 // pred_check
          %p718 = pneg %p236
        $region62: #{tpu_custom_call.1} parent=55 // pred_check_branch
          %720 = sbr.rel (%p718) target = $region64
        $region63: #{tpu_custom_call.1} parent=55 // pred_region
          %722 = vsyncadd %s714, 0
          %s723 = smul.addr %s24, 8
          %s724 = scalar_lea.hbm %s9, %s723
          %s726 = sshll.u32 %s717, 4
          %s727 = int_to_ptr.vmem [resolvable:$true] %s726
          %s728 = sshll.u32 %s724, 4
          %s729 = int_to_ptr.hbm [resolvable:$true] %s728
          %731 = dma.vmem_to_hbm [thread:$0]  %s727, 128, %s729, %s714
        $region64: #{tpu_custom_call.1} parent=55 // pred_fallthru
          _
      $region56: #{tpu_custom_call.1} parent=5 // pred_fallthru
        _
      %p732 = scmp.le.s32.totalorder 2, %s19
      // Predicated region
      $region65: #{tpu_custom_call.1} parent=5 // pred_check
        %p733 = pneg %p732
      $region66: #{tpu_custom_call.1} parent=5 // pred_check_branch
        %735 = sbr.rel (%p733) target = $region68
      $region67: #{tpu_custom_call.1} parent=5 // pred_region
        %s736 = ssub.s32 %s19, 2
        // Predicated region
        $region69: #{tpu_custom_call.1} parent=67 // pred_check
          %p737 = pneg %p242
        $region70: #{tpu_custom_call.1} parent=67 // pred_check_branch
          %739 = sbr.rel (%p737) target = $region72
        $region71: #{tpu_custom_call.1} parent=67 // pred_region
          %s740 = sand.u32 %s227, 1
          %s741 = scalar_lea.sflag [#allocation4], %s740
          %s742 = sand.u32 %s227, 1
          %s743 = smul.addr %s742, 8
          %s744 = scalar_lea.vmem [#allocation5], %s743
          %746 = dma.done %s741, 128
        $region72: #{tpu_custom_call.1} parent=67 // pred_fallthru
          _
      $region68: #{tpu_custom_call.1} parent=5 // pred_fallthru
        _
    $region6: #{tpu_custom_call.1} parent=1 // loop_footer
      %s23 = sadd.s32 1, %s19
    $region7: #{tpu_custom_call.1} parent=1 // loop_footer_branch
      %18 = sbr.rel target = $region3
    $region8: #{tpu_custom_call.1} parent=1 // loop_exit
      _
    %747 = vsyncpa [#allocation3], 1
    %s748 = scalar_lea.sflag [#allocation3], 1
    %749 = vsyncpa %s748, 1
    %750 = vsyncpa [#allocation4], 1
    %s751 = scalar_lea.sflag [#allocation4], 1
    %752 = vsyncpa %s751, 1

</llo_original>
